<compile_context>
chip_gen: v7x
topology: tpu7x:2x2x1
jax: 0.10.0
libtpu: 0.0.40
codegen_flags: <defaults>
</compile_context>

<pallas_src>
import jax
import jax.numpy as jnp
from jax import lax
from jax.experimental import pallas as pl
from jax.experimental.pallas import tpu as pltpu


# --------------------------------------------------------------------- squeeze kernel
def _squeeze_kernel(xp_ref, w1_ref, w2_ref, g_ref):
    """Fused conv4x4(on 4x4 pooled map) -> Swish -> conv1x1 -> Sigmoid. Runs once."""
    h = jnp.dot(xp_ref[...], w1_ref[...], preferred_element_type=jnp.float32)  # (B, Cout)
    h = h * jax.nn.sigmoid(h)                                                  # Swish
    g = jax.nn.sigmoid(jnp.dot(h, w2_ref[...], preferred_element_type=jnp.float32))
    g_ref[...] = g.astype(g_ref.dtype)


# --------------------------------------------------------------------- excite kernel
def _excite_kernel(g_ref, xb_ref, o_ref):
    """Per-channel gate broadcast along the lane-dense flattened spatial axis."""
    # g_ref: (B, tile_c, 1), xb_ref/o_ref: (B, tile_c, tile_s) -> pure VPU multiply.
    o_ref[...] = (xb_ref[...] * g_ref[...]).astype(o_ref.dtype)


# --------------------------------------------------------------------- tiling helper
def _pick_tiles(B, Cout, S, itemsize, per_block_budget=6 << 20):
    """VMEM-byte-budget tile picker: lane tile multiple of 128, channel tile mult of 8."""
    # Spatial (lane) tile: multiple of 128 (or the full axis when S < 128).
    tile_s = S if S < 128 else min((S // 128) * 128, 2048)
    # Channel (sublane) tile: full Cout, or a multiple of 8.
    tile_c = Cout

    def blk(tc, ts):
        return B * tc * ts * itemsize

    # Shrink the channel tile first (keeps the lane axis wide -> unmasked stores).
    while tile_c > 8 and tile_c % 16 == 0 and blk(tile_c, tile_s) > per_block_budget:
        tile_c //= 2
    while tile_s > 128 and blk(tile_c, tile_s) > per_block_budget:
        tile_s = max(128, ((tile_s // 2) // 128) * 128)

    # Give megacore (v7x) at least two "parallel" grid steps when the size allows it.
    if pl.cdiv(Cout, tile_c) * pl.cdiv(S, tile_s) < 2 and tile_s >= 256:
        tile_s = ((tile_s // 2) // 128) * 128
    return tile_c, tile_s


# --------------------------------------------------------------------- pooling (exact)
def _adaptive_avg_pool4(x):
    """Exact PyTorch AdaptiveAvgPool2d(4) (handles non-divisible spatial sizes)."""
    B, C, H, W = x.shape
    rows = []
    for i in range(4):
        h0, h1 = (i * H) // 4, -((-(i + 1) * H) // 4)
        cols = []
        for j in range(4):
            w0, w1 = (j * W) // 4, -((-(j + 1) * W) // 4)
            cols.append(x[:, :, h0:h1, w0:w1].mean(axis=(2, 3)))
        rows.append(jnp.stack(cols, axis=-1))
    return jnp.stack(rows, axis=-2)  # (B, C, 4, 4)


# --------------------------------------------------------------------- forward wrapper
def se_block(feat_small, feat_big, params, *, donate_feat_big=False):
    """feat_small: (B, Cin, Hs, Ws), feat_big: (B, Cout, Hb, Wb) -> (B, Cout, Hb, Wb)."""
    B, Cin, Hs, Ws = feat_small.shape
    Bb, Cout, Hb, Wb = feat_big.shape
    assert Bb == B

    # ---- squeeze path (computed once) -------------------------------------------
    pooled_flat = _adaptive_avg_pool4(feat_small).reshape(B, Cin * 16)
    # conv4x4 on a 4x4 map == matmul against the raw reshaped weight (no expansion).
    w1m = params["w1"].reshape(Cout, Cin * 16).T.astype(jnp.float32)   # (Cin*16, Cout)
    w2m = params["w2"][:, :, 0, 0].T.astype(jnp.float32)               # (Cout, Cout)

    g = pl.pallas_call(
        _squeeze_kernel,
        out_shape=jax.ShapeDtypeStruct((B, Cout), feat_big.dtype),
    )(pooled_flat, w1m, w2m)
    g3 = g.reshape(B, Cout, 1)   # lane-1 gate; broadcasts along the spatial lane axis

    # ---- excite path (streaming, HBM-bound) --------------------------------------
    S = Hb * Wb
    xb_flat = feat_big.reshape(B, Cout, S)            # contiguous (free) NCHW flatten
    tile_c, tile_s = _pick_tiles(B, Cout, S, jnp.dtype(feat_big.dtype).itemsize)
    grid = (pl.cdiv(Cout, tile_c), pl.cdiv(S, tile_s))

    out = pl.pallas_call(
        _excite_kernel,
        out_shape=jax.ShapeDtypeStruct((B, Cout, S), feat_big.dtype),
        grid=grid,
        in_specs=[
            pl.BlockSpec((B, tile_c, 1), lambda c, s: (0, c, 0)),       # gate (constant in s)
            pl.BlockSpec((B, tile_c, tile_s), lambda c, s: (0, c, s)),  # feat_big tile
        ],
        out_specs=pl.BlockSpec((B, tile_c, tile_s), lambda c, s: (0, c, s)),
        compiler_params=pltpu.CompilerParams(
            dimension_semantics=("parallel", "parallel"),
            vmem_limit_bytes=48 << 20),
        input_output_aliases={1: 0} if donate_feat_big else {},
    )(g3, xb_flat)
    return out.reshape(B, Cout, Hb, Wb)


# --------------------------------------------------------------------- params
def _spectral_normalize(w2d):
    # Spectral norm at its power-iteration fixed point: W / sigma_max(W).
    # TODO(synk): PyTorch spectral_norm uses a running power iteration; weights loaded
    # from a PyTorch checkpoint will differ slightly from this exact normalization.
    sigma = jnp.linalg.norm(w2d, ord=2)
    return w2d / sigma


def init_params(key, ch_in, ch_out):
    k1, k2 = jax.random.split(key)
    w1 = jax.random.normal(k1, (ch_out, ch_in, 4, 4), jnp.float32) * 0.2   # OIHW
    w1 = _spectral_normalize(w1.reshape(ch_out, -1)).reshape(w1.shape)
    w2 = jax.random.normal(k2, (ch_out, ch_out, 1, 1), jnp.float32) * 0.2  # OIHW
    w2 = _spectral_normalize(w2.reshape(ch_out, -1)).reshape(w2.shape)
    return dict(w1=w1, w2=w2)


# --------------------------------------------------------------------- reference
def reference_forward(feat_small, feat_big, params):
    """Pure-JAX reference (reshape-mean pool + XLA convs) for correctness checking."""
    B, Cin, Hs, Ws = feat_small.shape
    kh, kw = Hs // 4, Ws // 4
    pooled = feat_small.reshape(B, Cin, 4, kh, 4, kw).mean(axis=(3, 5))   # AdaptiveAvgPool2d(4)
    h = lax.conv_general_dilated(pooled, params["w1"], (1, 1), "VALID",
                                 dimension_numbers=("NCHW", "OIHW", "NCHW"))  # (B,Cout,1,1)
    h = h * jax.nn.sigmoid(h)                                             # Swish
    h = lax.conv_general_dilated(h, params["w2"], (1, 1), "VALID",
                                 dimension_numbers=("NCHW", "OIHW", "NCHW"))
    g = jax.nn.sigmoid(h)                                                 # (B, Cout, 1, 1)
    return feat_big * g


# --------------------------------------------------------------------- main
if __name__ == "__main__":
    key = jax.random.PRNGKey(0)
    B, ch_in, ch_out = 2, 4, 8
    Hs = Ws = 8        # feat_small spatial
    Hb = Wb = 16       # feat_big spatial
    k_s, k_b, k_p = jax.random.split(key, 3)

    feat_small = jax.random.normal(k_s, (B, ch_in, Hs, Ws), jnp.float32)   # torch NCHW
    feat_big = jax.random.normal(k_b, (B, ch_out, Hb, Wb), jnp.float32)    # torch NCHW
    params = init_params(k_p, ch_in, ch_out)

    out = se_block(feat_small, feat_big, params)
    out = jax.block_until_ready(out)

    ref = reference_forward(feat_small, feat_big, params)
    assert out.shape == (B, ch_out, Hb, Wb), out.shape
    max_err = float(jnp.max(jnp.abs(out - ref)))
    if max_err > 1e-4:
        raise SystemExit(f"Pallas/ref mismatch: max abs err = {max_err}")

    print("KERNEL_OK")
</pallas_src>

<mosaic_0001>
module attributes {stable_mosaic.version = 11 : i64} {
  func.func @_squeeze_kernel(%arg0: memref<2x64xf32, #tpu.memory_space<vmem>>, %arg1: memref<64x8xf32, #tpu.memory_space<vmem>>, %arg2: memref<8x8xf32, #tpu.memory_space<vmem>>, %arg3: memref<2x8xf32, #tpu.memory_space<vmem>>) attributes {dimension_semantics = [], scalar_prefetch = 0 : i64, scratch_operands = 0 : i64, tpu.core_type = #tpu.core_type<tc>} {
    %c0 = arith.constant 0 : index
    %c0_0 = arith.constant 0 : index
    %0 = vector.load %arg0[%c0, %c0_0] : memref<2x64xf32, #tpu.memory_space<vmem>>, vector<2x64xf32>
    %c0_1 = arith.constant 0 : index
    %c0_2 = arith.constant 0 : index
    %1 = vector.load %arg1[%c0_1, %c0_2] : memref<64x8xf32, #tpu.memory_space<vmem>>, vector<64x8xf32>
    %cst = arith.constant dense<0.000000e+00> : vector<2x8xf32>
    %2 = tpu.matmul %0, %1, %cst {dimension_numbers = #tpu.dot_dimension_numbers<[1], [0], [0], [1], [0, 0, 1, 1], [], []>} : vector<2x64xf32>, vector<64x8xf32>, vector<2x8xf32> -> vector<2x8xf32>
    %3 = arith.negf %2 : vector<2x8xf32>
    %4 = math.exp %3 : vector<2x8xf32>
    %cst_3 = arith.constant 1.000000e+00 : f32
    %5 = vector.broadcast %cst_3 : f32 to vector<2x8xf32>
    %6 = arith.addf %5, %4 : vector<2x8xf32>
    %7 = arith.divf %5, %6 : vector<2x8xf32>
    %8 = arith.mulf %2, %7 : vector<2x8xf32>
    %c0_4 = arith.constant 0 : index
    %c0_5 = arith.constant 0 : index
    %9 = vector.load %arg2[%c0_4, %c0_5] : memref<8x8xf32, #tpu.memory_space<vmem>>, vector<8x8xf32>
    %cst_6 = arith.constant dense<0.000000e+00> : vector<2x8xf32>
    %10 = tpu.matmul %8, %9, %cst_6 {dimension_numbers = #tpu.dot_dimension_numbers<[1], [0], [0], [1], [0, 0, 1, 1], [], []>} : vector<2x8xf32>, vector<8x8xf32>, vector<2x8xf32> -> vector<2x8xf32>
    %11 = arith.negf %10 : vector<2x8xf32>
    %12 = math.exp %11 : vector<2x8xf32>
    %cst_7 = arith.constant 1.000000e+00 : f32
    %13 = vector.broadcast %cst_7 : f32 to vector<2x8xf32>
    %14 = arith.addf %13, %12 : vector<2x8xf32>
    %15 = arith.divf %13, %14 : vector<2x8xf32>
    %c0_8 = arith.constant 0 : index
    %c0_9 = arith.constant 0 : index
    %16 = vector.load %arg3[%c0_8, %c0_9] : memref<2x8xf32, #tpu.memory_space<vmem>>, vector<2x8xf32>
    tpu.vector_store %arg3[%c0_8, %c0_9], %15 {strides = array<i32>} : memref<2x8xf32, #tpu.memory_space<vmem>>, vector<2x8xf32>,
    return
  }
}

</mosaic_0001>

<llo_original>
// kernel: tpu_custom_call.1
$region0: #{tpu_custom_call.1}
  #allocation0 [shape = 'u32[]', space=smem, size = 0x4, offset = 0x4, fixed_abs, tag = 'smem constant byte address 0x4 - core index']
  #allocation1 [shape = 'u32[144,128]{1,0:T(1,128)}', space=vmem, size = 0x12000, scoped, tag = 'internal scratch']
  %s0 = inlined_call_operand.vmem [shape: f32[2,64], index: 0, kind: input, shape index: {}]
  %s1 = inlined_call_operand.vmem [shape: f32[64,8], index: 1, kind: input, shape index: {}]
  %s2 = inlined_call_operand.vmem [shape: f32[8,8], index: 2, kind: input, shape index: {}]
  %s3 = inlined_call_operand.hbm [shape: f32[2,8], index: 3, kind: output, shape index: {}]
  %s4 = sld [smem:[#allocation0]]
  $region22: #{tpu_custom_call.1} parent=0
    _
  %s6 = ssub.s32 1, %s4
  %s7 = scalar_select 0, %s6, %s4
  $region1: #{tpu_custom_call.1} parent=0
    #allocation2 [shape = 'u8[1024]{0}', space=vmem, size = 0x400, scoped, tag = 'output window, operand 0, single buffered']
    #allocation3 [shape = 's32[1]{0}', space=sflag, size = 0x4, scoped, tag = 'scoped memory for tpu_custom_call.1']
    %8 = vsyncpa [#allocation3], 0
    // Predicated region
    $region2: #{tpu_custom_call.1} parent=1 // pred_check
      _
    $region3: #{tpu_custom_call.1} parent=1 // pred_check_branch
      %10 = sbr.rel (0) target = $region5
    $region4: #{tpu_custom_call.1} parent=1 // pred_region
      _
    $region5: #{tpu_custom_call.1} parent=1 // pred_fallthru
      _
    // Predicated region
    $region6: #{tpu_custom_call.1} parent=1 // pred_check
      _
    $region7: #{tpu_custom_call.1} parent=1 // pred_check_branch
      %12 = sbr.rel (0) target = $region9
    $region8: #{tpu_custom_call.1} parent=1 // pred_region
      _
    $region9: #{tpu_custom_call.1} parent=1 // pred_fallthru
      _
    // Predicated region
    $region10: #{tpu_custom_call.1} parent=1 // pred_check
      _
    $region11: #{tpu_custom_call.1} parent=1 // pred_check_branch
      %14 = sbr.rel (0) target = $region13
    $region12: #{tpu_custom_call.1} parent=1 // pred_region
      _
    $region13: #{tpu_custom_call.1} parent=1 // pred_fallthru
      _
    %v15 = vld [vmem:[%s0] sm:$0x3]
    %v16 = vld [vmem:[%s1] sm:$0xff]
    %v17 = vld [vmem:[%s1 + $0x8] sm:$0xff]
    %v18 = vld [vmem:[%s1 + $0x10] sm:$0xff]
    %v19 = vld [vmem:[%s1 + $0x18] sm:$0xff]
    %v20 = vld [vmem:[%s1 + $0x20] sm:$0xff]
    %v21 = vld [vmem:[%s1 + $0x28] sm:$0xff]
    %v22 = vld [vmem:[%s1 + $0x30] sm:$0xff]
    %v23 = vld [vmem:[%s1 + $0x38] sm:$0xff]
    %vm24 = vcmask 523264
    %v26 = vsel %vm24, %v15, 0
    %28 = vmatprep.subr.mxu0 0.0
    %29 = vmatpush1.msra.mxu0 %v16
    %30 = vmatprep.subr.mxu0 0.0
    %31 = vmatpush1.msra.mxu0 %v17
    %32 = vmatprep.subr.mxu0 0.0
    %33 = vmatpush1.msra.mxu0 %v18
    %34 = vmatprep.subr.mxu0 0.0
    %35 = vmatpush1.msra.mxu0 %v19
    %36 = vmatprep.subr.mxu0 0.0
    %37 = vmatpush1.msra.mxu0 %v20
    %38 = vmatprep.subr.mxu0 0.0
    %39 = vmatpush1.msra.mxu0 %v21
    %40 = vmatprep.subr.mxu0 0.0
    %41 = vmatpush1.msra.mxu0 %v22
    %42 = vmatprep.subr.mxu0 0.0
    %43 = vmatpush1.msra.mxu0 %v23
    %44 = vmatprep.subr.mxu0 0.0
    %45 = vmatpush1.msra.mxu0 0.0
    %46 = vmatprep.subr.mxu0 0.0
    %47 = vmatpush1.msra.mxu0 0.0
    %48 = vmatprep.subr.mxu0 0.0
    %49 = vmatpush1.msra.mxu0 0.0
    %50 = vmatprep.subr.mxu0 0.0
    %51 = vmatpush1.msra.mxu0 0.0
    %52 = vmatprep.subr.mxu0 0.0
    %53 = vmatpush1.msra.mxu0 0.0
    %54 = vmatprep.subr.mxu0 0.0
    %55 = vmatpush1.msra.mxu0 0.0
    %56 = vmatprep.subr.mxu0 0.0
    %57 = vmatpush1.msra.mxu0 0.0
    %58 = vmatprep.subr.mxu0 0.0
    %59 = vmatpush1.msra.mxu0 0.0
    %60 = vmatprep.subr.mxu0 0.0
    %61 = vmatpush1.msra.mxu0 0.0
    %62 = vmatprep.subr.mxu0 0.0
    %63 = vmatpush1.msra.mxu0 0.0
    %64 = vmatprep.subr.mxu0 0.0
    %65 = vmatpush1.msra.mxu0 0.0
    %66 = vmatprep.subr.mxu0 0.0
    %67 = vmatpush1.msra.mxu0 0.0
    %68 = vmatprep.subr.mxu0 0.0
    %69 = vmatpush1.msra.mxu0 0.0
    %70 = vmatprep.subr.mxu0 0.0
    %71 = vmatpush1.msra.mxu0 0.0
    %72 = vmatprep.subr.mxu0 0.0
    %73 = vmatpush1.msra.mxu0 0.0
    %74 = vmatprep.subr.mxu0 0.0
    %75 = vmatpush1.msra.mxu0 0.0
    %76 = vmatprep.subr.mxu0 0.0
    %77 = vmatpush1.msra.mxu0 0.0
    %78 = vmatprep.subr.mxu0 0.0
    %79 = vmatpush1.msra.mxu0 0.0
    %80 = vmatprep.subr.mxu0 0.0
    %81 = vmatpush1.msra.mxu0 0.0
    %82 = vmatprep.subr.mxu0 0.0
    %83 = vmatpush1.msra.mxu0 0.0
    %84 = vmatprep.subr.mxu0 0.0
    %85 = vmatpush1.msra.mxu0 0.0
    %86 = vmatprep.subr.mxu0 0.0
    %87 = vmatpush1.msra.mxu0 0.0
    %88 = vmatprep.subr.mxu0 0.0
    %89 = vmatpush1.msra.mxu0 0.0
    %90 = vmatprep.subr.mxu0 0.0
    %91 = vmatpush1.msra.mxu0 0.0
    %92 = vmatprep.mubr.f32.mxu0 0.0
    %93 = vmatmul.mubr.f32.gmra.mrb[0].mxu0 %v26
    %v94 = vpop.f32.mrb[0].mxu0
    %v95 = vadd.f32 0.0, %v94
    %v96 = vpop.f32.mrb[0].mxu0
    %97 = vdwg.mxu0
    %v98 = vxor.u32 %v95, 2147483648
    %v99 = vmul.f32 %v98, 1.442695
    %v100 = vpow.pop %v99
    %v101 = vadd.f32 %v100, 1.0
    %v102 = vrcp.pop %v101
    %v103 = vmul.f32 1.0, %v102
    %v104 = vmul.f32 %v95, %v103
    %v105 = vld [vmem:[%s2] sm:$0xff]
    %vm106 = vcmask 64512
    %v108 = vsel %vm106, %v104, 0
    %110 = vmatprep.subr.mxu0 0.0
    %111 = vmatpush1.msra.mxu0 %v105
    %112 = vmatprep.subr.mxu0 0.0
    %113 = vmatpush1.msra.mxu0 0.0
    %114 = vmatprep.subr.mxu0 0.0
    %115 = vmatpush1.msra.mxu0 0.0
    %116 = vmatprep.subr.mxu0 0.0
    %117 = vmatpush1.msra.mxu0 0.0
    %118 = vmatprep.subr.mxu0 0.0
    %119 = vmatpush1.msra.mxu0 0.0
    %120 = vmatprep.subr.mxu0 0.0
    %121 = vmatpush1.msra.mxu0 0.0
    %122 = vmatprep.subr.mxu0 0.0
    %123 = vmatpush1.msra.mxu0 0.0
    %124 = vmatprep.subr.mxu0 0.0
    %125 = vmatpush1.msra.mxu0 0.0
    %126 = vmatprep.subr.mxu0 0.0
    %127 = vmatpush1.msra.mxu0 0.0
    %128 = vmatprep.subr.mxu0 0.0
    %129 = vmatpush1.msra.mxu0 0.0
    %130 = vmatprep.subr.mxu0 0.0
    %131 = vmatpush1.msra.mxu0 0.0
    %132 = vmatprep.subr.mxu0 0.0
    %133 = vmatpush1.msra.mxu0 0.0
    %134 = vmatprep.subr.mxu0 0.0
    %135 = vmatpush1.msra.mxu0 0.0
    %136 = vmatprep.subr.mxu0 0.0
    %137 = vmatpush1.msra.mxu0 0.0
    %138 = vmatprep.subr.mxu0 0.0
    %139 = vmatpush1.msra.mxu0 0.0
    %140 = vmatprep.subr.mxu0 0.0
    %141 = vmatpush1.msra.mxu0 0.0
    %142 = vmatprep.subr.mxu0 0.0
    %143 = vmatpush1.msra.mxu0 0.0
    %144 = vmatprep.subr.mxu0 0.0
    %145 = vmatpush1.msra.mxu0 0.0
    %146 = vmatprep.subr.mxu0 0.0
    %147 = vmatpush1.msra.mxu0 0.0
    %148 = vmatprep.subr.mxu0 0.0
    %149 = vmatpush1.msra.mxu0 0.0
    %150 = vmatprep.subr.mxu0 0.0
    %151 = vmatpush1.msra.mxu0 0.0
    %152 = vmatprep.subr.mxu0 0.0
    %153 = vmatpush1.msra.mxu0 0.0
    %154 = vmatprep.subr.mxu0 0.0
    %155 = vmatpush1.msra.mxu0 0.0
    %156 = vmatprep.subr.mxu0 0.0
    %157 = vmatpush1.msra.mxu0 0.0
    %158 = vmatprep.subr.mxu0 0.0
    %159 = vmatpush1.msra.mxu0 0.0
    %160 = vmatprep.subr.mxu0 0.0
    %161 = vmatpush1.msra.mxu0 0.0
    %162 = vmatprep.subr.mxu0 0.0
    %163 = vmatpush1.msra.mxu0 0.0
    %164 = vmatprep.subr.mxu0 0.0
    %165 = vmatpush1.msra.mxu0 0.0
    %166 = vmatprep.subr.mxu0 0.0
    %167 = vmatpush1.msra.mxu0 0.0
    %168 = vmatprep.subr.mxu0 0.0
    %169 = vmatpush1.msra.mxu0 0.0
    %170 = vmatprep.subr.mxu0 0.0
    %171 = vmatpush1.msra.mxu0 0.0
    %172 = vmatprep.subr.mxu0 0.0
    %173 = vmatpush1.msra.mxu0 0.0
    %174 = vmatprep.mubr.f32.mxu0 0.0
    %175 = vmatmul.mubr.f32.gmra.mrb[0].mxu0 %v108
    %v176 = vpop.f32.mrb[0].mxu0
    %v177 = vadd.f32 0.0, %v176
    %v178 = vpop.f32.mrb[0].mxu0
    %179 = vdwg.mxu0
    %v180 = vxor.u32 %v177, 2147483648
    %v181 = vmul.f32 %v180, 1.442695
    %v182 = vpow.pop %v181
    %v183 = vadd.f32 %v182, 1.0
    %v184 = vrcp.pop %v183
    %v185 = vmul.f32 1.0, %v184
    %vm186 = vcmask 58368
    %187 = vst.msk [vmem:[#allocation2] sm:$0x3] %vm186, %v185
    // Predicated region
    $region14: #{tpu_custom_call.1} parent=1 // pred_check
      _
    $region15: #{tpu_custom_call.1} parent=1 // pred_check_branch
      %189 = sbr.rel (0) target = $region17
    $region16: #{tpu_custom_call.1} parent=1 // pred_region
      %s191 = ssub.s32 32, 32
      %192 = vsyncadd [#allocation3], %s191
      %s194 = sshll.u32 [#allocation2], 4
      %s195 = int_to_ptr.vmem [resolvable:$true] %s194
      %197 = dma.vmem_to_hbm [thread:$0]  %s195, 32, %s3, [#allocation3]
    $region17: #{tpu_custom_call.1} parent=1 // pred_fallthru
      _
    // Predicated region
    $region18: #{tpu_custom_call.1} parent=1 // pred_check
      _
    $region19: #{tpu_custom_call.1} parent=1 // pred_check_branch
      %199 = sbr.rel (0) target = $region21
    $region20: #{tpu_custom_call.1} parent=1 // pred_region
      %200 = dma.done [#allocation3], 32
    $region21: #{tpu_custom_call.1} parent=1 // pred_fallthru
      _
    %201 = vsyncpa [#allocation3], 1

</llo_original>
